<compile_context>
chip_gen: v5e
topology: v5e:2x2
jax: 0.10.0
libtpu: 0.0.40
codegen_flags: <defaults>
</compile_context>

<pallas_src>
from functools import partial

import jax
import jax.numpy as jnp
from jax.experimental import pallas as pl
from jax.experimental.pallas import tpu as pltpu

_LANES = 128


def _channel_attention_kernel(x_ref, w1_ref, b1_ref, w2_ref, b2_ref, o_ref,
                              sum_ref, sumsq_ref, max_ref, shift_ref,
                              *, T, Tpad, C):
    """Streaming (shifted) stats over T + fused fc1/relu/fc2/sigmoid/clamp."""
    f32 = jnp.float32
    t = pl.program_id(1)
    nt = pl.num_programs(1)
    Tt = x_ref.shape[-1]
    n_chunks = Tt // _LANES
    pad = Tpad - T                       # 0 <= pad < 128 (static)

    # ---- init accumulators + shift at the start of each reduction sweep ----
    @pl.when(t == 0)
    def _():
        x0 = x_ref[:, :, 0:_LANES].astype(f32)               # (Bb, C, 128)
        shift = jnp.mean(x0, axis=-1, keepdims=True)          # (Bb, C, 1)
        shift_ref[...] = jnp.broadcast_to(shift, shift_ref.shape)
        sum_ref[...] = jnp.zeros_like(sum_ref)
        sumsq_ref[...] = jnp.zeros_like(sumsq_ref)
        max_ref[...] = jnp.full_like(max_ref, -jnp.inf)

    # ---- pure-VPU accumulation over this T tile, 128 lanes at a time -------
    # (lane-resident accumulators; the cross-lane reduce is deferred to the
    # epilogue so the streaming loop stays on vld + VALU slots only)
    shift = shift_ref[...]                                     # (Bb, C, 128)
    s = sum_ref[...]
    q = sumsq_ref[...]
    m = max_ref[...]
    for kc in range(n_chunks):                                 # static unroll
        xs = x_ref[:, :, kc * _LANES:(kc + 1) * _LANES].astype(f32)
        if pad > 0 and kc == n_chunks - 1:
            # Only the last chunk of the last T tile contains padded lanes.
            lane = jax.lax.broadcasted_iota(jnp.int32, xs.shape, 2)
            keep = jnp.logical_or(t < nt - 1, lane < (_LANES - pad))
            d = jnp.where(keep, xs - shift, 0.0)
            m = jnp.maximum(m, jnp.where(keep, xs, -jnp.inf))
        else:
            d = xs - shift
            m = jnp.maximum(m, xs)
        s = s + d
        q = q + d * d
    sum_ref[...] = s
    sumsq_ref[...] = q
    max_ref[...] = m

    # ---- epilogue on the last T tile ----------------------------------------
    @pl.when(t == nt - 1)
    def _():
        fmax = float(jnp.finfo(o_ref.dtype).max)   # torch.finfo(x.dtype).max

        k = jnp.max(shift_ref[...], axis=-1)       # (Bb, C); all lanes equal
        sd = jnp.sum(sum_ref[...], axis=-1)        # sum(x - k)
        qd = jnp.sum(sumsq_ref[...], axis=-1)      # sum((x - k)^2)
        xmax = jnp.max(max_ref[...], axis=-1)      # (Bb, C)

        mean = k + sd / f32(T)
        # Unbiased variance (torch.std default, divide by T-1).  Shifted
        # formula is cancellation-safe; clamp >= 0 guards residual error.
        # NOTE: T == 1 divides by zero (NaN), matching torch.std behaviour.
        var = (qd - sd * (sd / f32(T))) / f32(T - 1)
        std = jnp.clip(jnp.sqrt(jnp.maximum(var, 0.0)), 1e-10, fmax)

        # fc1 on concat([mean, std, max], dim=1) without materializing the
        # concat: split W1's rows.  Cast dot operands to the weight dtype so
        # bf16 weights run the MXU in bf16 with f32 accumulation.
        w1 = w1_ref[...]
        wdt = w1.dtype
        h = (jnp.dot(mean.astype(wdt), w1[0:C, :], preferred_element_type=f32)
             + jnp.dot(std.astype(wdt), w1[C:2 * C, :], preferred_element_type=f32)
             + jnp.dot(xmax.astype(wdt), w1[2 * C:3 * C, :], preferred_element_type=f32)
             + b1_ref[...].astype(f32))             # (Bb, H)
        h = jnp.maximum(h, 0.0)                     # ReLU

        w2 = w2_ref[...]
        out = jnp.dot(h.astype(w2.dtype), w2, preferred_element_type=f32)
        out = out + b2_ref[...].astype(f32)         # (Bb, C)
        out = 1.0 / (1.0 + jnp.exp(-out))           # sigmoid
        out = jnp.clip(out, 1e-6, fmax)             # clamp(min=1e-6, max=finfo.max)

        o_ref[...] = out[:, None, :].astype(o_ref.dtype)      # (Bb, 1, C)


def _vmem_budget():
    """(per-x-block byte budget, vmem_limit_bytes) derived from the chip."""
    try:
        cap = int(pltpu.get_tpu_info().vmem_capacity_bytes)
    except Exception:
        cap = 64 << 20                           # conservative: v7x per-TC VMEM
    cap = max(cap, 32 << 20)
    vmem_limit = min((cap * 3) // 4, 96 << 20)   # ~96 MiB v5e/v6e, 48 MiB v7x
    return vmem_limit // 3, vmem_limit           # x is double-buffered (2 blocks)


def _choose_tile_t(Tpad, C, itemsize, max_block_bytes, max_lanes=2048):
    """Largest multiple-of-128 divisor of Tpad (<= max_lanes) whose (1, C, Tt)
    slab fits the budget; 128 always remains the legal fallback."""
    best = _LANES
    tt = _LANES
    while tt <= Tpad:
        if (Tpad % tt == 0 and tt <= max_lanes
                and C * tt * itemsize <= max_block_bytes):
            best = tt
        tt += _LANES
    return best


def _choose_batch_block(B, C, Tt, itemsize, max_block_bytes):
    """Largest divisor of B (capped at B//2 so the 'parallel' grid axis keeps
    extent >= 2 on 2-TC chips) whose double-buffered x block plus the four
    (Bb, C, 128) f32 accumulators fit the budget."""
    bb_cap = max(1, B // 2) if B >= 2 else 1
    x_per_b = C * Tt * itemsize
    acc_per_b = 4 * C * _LANES * 4               # sum/sumsq/max/shift, f32
    bb = 1
    for cand in range(1, bb_cap + 1):
        if B % cand != 0:
            continue
        if cand * (2 * x_per_b + acc_per_b) <= 2 * max_block_bytes:
            bb = cand
    return bb


def channel_attention_1d(x, w1, b1, w2, b2, *, max_block_bytes=None):
    """x: (B, C, T); w1: (3C, H); b1: (H,); w2: (H, C); b2: (C,).

    Returns (B, C, 1), matching the PyTorch module's output.
    """
    B, C, T = x.shape
    H = w1.shape[1]
    assert w1.shape == (3 * C, H)
    assert w2.shape == (H, C)

    auto_budget, vmem_limit = _vmem_budget()
    if max_block_bytes is None:
        max_block_bytes = auto_budget

    # Pad T up to a lane multiple (zeros); padded lanes are masked in-kernel.
    Tpad = ((T + _LANES - 1) // _LANES) * _LANES
    x_in = x if Tpad == T else jnp.pad(x, ((0, 0), (0, 0), (0, Tpad - T)))

    Tt = _choose_tile_t(Tpad, C, x.dtype.itemsize, max_block_bytes)
    Bb = _choose_batch_block(B, C, Tt, x.dtype.itemsize, max_block_bytes)
    grid = (B // Bb, Tpad // Tt)

    b1_2d = b1.reshape(1, H)
    b2_2d = b2.reshape(1, C)

    cost = pl.CostEstimate(
        flops=int(5 * B * C * Tpad + 2 * B * (3 * C * H + H * C)),
        transcendentals=int(2 * B * C),
        bytes_accessed=int(x_in.size * x.dtype.itemsize
                           + (w1.size + b1.size + w2.size + b2.size)
                           * w1.dtype.itemsize
                           + B * C * x.dtype.itemsize),
    )

    out = pl.pallas_call(
        partial(_channel_attention_kernel, T=T, Tpad=Tpad, C=C),
        out_shape=jax.ShapeDtypeStruct((B, 1, C), x.dtype),
        grid=grid,
        in_specs=[
            # TODO(synk): if profiling shows exposed DMA at small Tt, bump this
            # spec to pipeline_mode=pl.Buffered(3) (re-check the v7x budget).
            pl.BlockSpec((Bb, C, Tt), lambda b, t: (b, 0, t)),
            pl.BlockSpec((3 * C, H), lambda b, t: (0, 0)),
            pl.BlockSpec((1, H), lambda b, t: (0, 0)),
            pl.BlockSpec((H, C), lambda b, t: (0, 0)),
            pl.BlockSpec((1, C), lambda b, t: (0, 0)),
        ],
        out_specs=pl.BlockSpec((Bb, 1, C), lambda b, t: (b, 0, 0)),
        scratch_shapes=[
            pltpu.VMEM((Bb, C, _LANES), jnp.float32),   # running sum(x - k)
            pltpu.VMEM((Bb, C, _LANES), jnp.float32),   # running sum((x-k)^2)
            pltpu.VMEM((Bb, C, _LANES), jnp.float32),   # running max(x)
            pltpu.VMEM((Bb, C, _LANES), jnp.float32),   # shift k (lane-bcast)
        ],
        compiler_params=pltpu.CompilerParams(
            dimension_semantics=("parallel", "arbitrary"),
            vmem_limit_bytes=vmem_limit),
        cost_estimate=cost,
    )(x_in, w1, b1_2d, w2, b2_2d)

    # (B, 1, C) -> (B, C, 1) to match `out.unsqueeze(-1)` in PyTorch.
    return out.reshape(B, C)[..., None]


def _reference(x, w1, b1, w2, b2):
    """Plain-JAX reference mirroring the PyTorch forward."""
    fmax = jnp.finfo(x.dtype).max
    mean = jnp.mean(x, axis=2)
    std = jnp.clip(jnp.std(x, axis=2, ddof=1), 1e-10, fmax)
    mx = jnp.max(x, axis=2)
    feat = jnp.concatenate([mean, std, mx], axis=1)
    h = jnp.maximum(feat @ w1 + b1, 0.0)
    out = h @ w2 + b2
    out = jax.nn.sigmoid(out)[..., None]
    return jnp.clip(out, 1e-6, fmax)


if __name__ == "__main__":
    # Module config: in_planes=32, ratio=16 -> hidden = 32 // 16 = 2.
    B, C, ratio = 2, 32, 16
    H = C // ratio
    T = 256

    key = jax.random.PRNGKey(0)
    kx, k1, k2, k3, k4 = jax.random.split(key, 5)

    x = jax.random.normal(kx, (B, C, T), dtype=jnp.float32)
    # Deterministic synthetic parameters (Linear shapes from __init__),
    # stored as (in_features, out_features).
    w1 = 0.1 * jax.random.normal(k1, (3 * C, H), dtype=jnp.float32)
    b1 = 0.1 * jax.random.normal(k2, (H,), dtype=jnp.float32)
    w2 = 0.1 * jax.random.normal(k3, (H, C), dtype=jnp.float32)
    b2 = 0.1 * jax.random.normal(k4, (C,), dtype=jnp.float32)

    y_ref = _reference(x, w1, b1, w2, b2)

    # 1) Default tiling (whole T in one lane-aligned tile).
    y = jax.block_until_ready(channel_attention_1d(x, w1, b1, w2, b2))
    assert y.shape == (B, C, 1), y.shape
    assert jnp.allclose(y, y_ref, atol=1e-5, rtol=1e-5), (
        float(jnp.max(jnp.abs(y - y_ref))))

    # 2) Force Tt=128 -> 2 streaming reduction steps (multi-tile accumulators).
    y2 = jax.block_until_ready(
        channel_attention_1d(x, w1, b1, w2, b2,
                             max_block_bytes=C * 128 * x.dtype.itemsize))
    assert jnp.allclose(y2, y_ref, atol=1e-5, rtol=1e-5), (
        float(jnp.max(jnp.abs(y2 - y_ref))))

    # 3) Ragged T (not a lane multiple) -> wrapper pads, kernel masks the tail.
    Tr = 200
    xr = jax.random.normal(kx, (B, C, Tr), dtype=jnp.float32)
    yr_ref = _reference(xr, w1, b1, w2, b2)
    yr = jax.block_until_ready(channel_attention_1d(xr, w1, b1, w2, b2))
    assert jnp.allclose(yr, yr_ref, atol=1e-5, rtol=1e-5), (
        float(jnp.max(jnp.abs(yr - yr_ref))))

    # 4) Larger batch -> exercises the Bb > 1 batched-epilogue path.
    Bl = 8
    xl = jax.random.normal(k1, (Bl, C, T), dtype=jnp.float32)
    yl_ref = _reference(xl, w1, b1, w2, b2)
    yl = jax.block_until_ready(channel_attention_1d(xl, w1, b1, w2, b2))
    assert jnp.allclose(yl, yl_ref, atol=1e-5, rtol=1e-5), (
        float(jnp.max(jnp.abs(yl - yl_ref))))

    print("KERNEL_OK")
</pallas_src>

<mosaic_0001>
module attributes {stable_mosaic.version = 11 : i64} {
  func.func @_channel_attention_kernel(%arg0: i32, %arg1: i32, %arg2: memref<1x32x256xf32, #tpu.memory_space<vmem>>, %arg3: memref<96x2xf32, #tpu.memory_space<vmem>>, %arg4: memref<1x2xf32, #tpu.memory_space<vmem>>, %arg5: memref<2x32xf32, #tpu.memory_space<vmem>>, %arg6: memref<1x32xf32, #tpu.memory_space<vmem>>, %arg7: memref<1x1x32xf32, #tpu.memory_space<vmem>>, %arg8: memref<1x32x128xf32, #tpu.memory_space<vmem>>, %arg9: memref<1x32x128xf32, #tpu.memory_space<vmem>>, %arg10: memref<1x32x128xf32, #tpu.memory_space<vmem>>, %arg11: memref<1x32x128xf32, #tpu.memory_space<vmem>>) attributes {dimension_semantics = [#tpu.dimension_semantics<parallel>, #tpu.dimension_semantics<arbitrary>], iteration_bounds = array<i64: 2, 1>, scalar_prefetch = 0 : i64, scratch_operands = 4 : i64, tpu.core_type = #tpu.core_type<tc>, window_params = [{transform_indices = @transform_0, window_bounds = array<i64: 1, 32, 256>}, {pipeline_mode = #tpu.pipeline_mode<synchronous>, transform_indices = @transform_1, window_bounds = array<i64: 96, 2>}, {pipeline_mode = #tpu.pipeline_mode<synchronous>, transform_indices = @transform_2, window_bounds = array<i64: 1, 2>}, {pipeline_mode = #tpu.pipeline_mode<synchronous>, transform_indices = @transform_3, window_bounds = array<i64: 2, 32>}, {pipeline_mode = #tpu.pipeline_mode<synchronous>, transform_indices = @transform_4, window_bounds = array<i64: 1, 32>}, {transform_indices = @transform_5, window_bounds = array<i64: 1, 1, 32>}]} {
    %c0_i32 = arith.constant 0 : i32
    %0 = arith.cmpi eq, %arg1, %c0_i32 : i32
    %1 = arith.extui %0 : i1 to i32
    %c0_i32_0 = arith.constant 0 : i32
    %2 = arith.cmpi ne, %1, %c0_i32_0 : i32
    scf.if %2 {
      %c0_28 = arith.constant 0 : index
      %c0_29 = arith.constant 0 : index
      %c0_30 = arith.constant 0 : index
      %25 = vector.load %arg2[%c0_28, %c0_29, %c0_30] : memref<1x32x256xf32, #tpu.memory_space<vmem>>, vector<1x32x128xf32>
      %cst = arith.constant dense<0.000000e+00> : vector<1x32xf32>
      %26 = vector.multi_reduction <add>, %25, %cst [2] : vector<1x32x128xf32> to vector<1x32xf32>
      %27 = vector.shape_cast %26 : vector<1x32xf32> to vector<1x32x1xf32>
      %cst_31 = arith.constant 1.280000e+02 : f32
      %28 = vector.broadcast %cst_31 : f32 to vector<1x32x1xf32>
      %29 = arith.divf %27, %28 : vector<1x32x1xf32>
      %30 = vector.shape_cast %29 : vector<1x32x1xf32> to vector<1x32x1xf32>
      %31 = vector.broadcast %30 : vector<1x32x1xf32> to vector<1x32x128xf32>
      %c0_32 = arith.constant 0 : index
      %c0_33 = arith.constant 0 : index
      %c0_34 = arith.constant 0 : index
      %32 = vector.load %arg11[%c0_32, %c0_33, %c0_34] : memref<1x32x128xf32, #tpu.memory_space<vmem>>, vector<1x32x128xf32>
      tpu.vector_store %arg11[%c0_32, %c0_33, %c0_34], %31 {strides = array<i32>} : memref<1x32x128xf32, #tpu.memory_space<vmem>>, vector<1x32x128xf32>,
      %cst_35 = arith.constant 0.000000e+00 : f32
      %33 = vector.broadcast %cst_35 : f32 to vector<1x32x128xf32>
      %c0_36 = arith.constant 0 : index
      %c0_37 = arith.constant 0 : index
      %c0_38 = arith.constant 0 : index
      %34 = vector.load %arg8[%c0_36, %c0_37, %c0_38] : memref<1x32x128xf32, #tpu.memory_space<vmem>>, vector<1x32x128xf32>
      tpu.vector_store %arg8[%c0_36, %c0_37, %c0_38], %33 {strides = array<i32>} : memref<1x32x128xf32, #tpu.memory_space<vmem>>, vector<1x32x128xf32>,
      %cst_39 = arith.constant 0.000000e+00 : f32
      %35 = vector.broadcast %cst_39 : f32 to vector<1x32x128xf32>
      %c0_40 = arith.constant 0 : index
      %c0_41 = arith.constant 0 : index
      %c0_42 = arith.constant 0 : index
      %36 = vector.load %arg9[%c0_40, %c0_41, %c0_42] : memref<1x32x128xf32, #tpu.memory_space<vmem>>, vector<1x32x128xf32>
      tpu.vector_store %arg9[%c0_40, %c0_41, %c0_42], %35 {strides = array<i32>} : memref<1x32x128xf32, #tpu.memory_space<vmem>>, vector<1x32x128xf32>,
      %cst_43 = arith.constant 0xFF800000 : f32
      %37 = vector.broadcast %cst_43 : f32 to vector<1x32x128xf32>
      %c0_44 = arith.constant 0 : index
      %c0_45 = arith.constant 0 : index
      %c0_46 = arith.constant 0 : index
      %38 = vector.load %arg10[%c0_44, %c0_45, %c0_46] : memref<1x32x128xf32, #tpu.memory_space<vmem>>, vector<1x32x128xf32>
      tpu.vector_store %arg10[%c0_44, %c0_45, %c0_46], %37 {strides = array<i32>} : memref<1x32x128xf32, #tpu.memory_space<vmem>>, vector<1x32x128xf32>,
    } else {
    }
    %c0 = arith.constant 0 : index
    %c0_1 = arith.constant 0 : index
    %c0_2 = arith.constant 0 : index
    %3 = vector.load %arg11[%c0, %c0_1, %c0_2] : memref<1x32x128xf32, #tpu.memory_space<vmem>>, vector<1x32x128xf32>
    %c0_3 = arith.constant 0 : index
    %c0_4 = arith.constant 0 : index
    %c0_5 = arith.constant 0 : index
    %4 = vector.load %arg8[%c0_3, %c0_4, %c0_5] : memref<1x32x128xf32, #tpu.memory_space<vmem>>, vector<1x32x128xf32>
    %c0_6 = arith.constant 0 : index
    %c0_7 = arith.constant 0 : index
    %c0_8 = arith.constant 0 : index
    %5 = vector.load %arg9[%c0_6, %c0_7, %c0_8] : memref<1x32x128xf32, #tpu.memory_space<vmem>>, vector<1x32x128xf32>
    %c0_9 = arith.constant 0 : index
    %c0_10 = arith.constant 0 : index
    %c0_11 = arith.constant 0 : index
    %6 = vector.load %arg10[%c0_9, %c0_10, %c0_11] : memref<1x32x128xf32, #tpu.memory_space<vmem>>, vector<1x32x128xf32>
    %c0_12 = arith.constant 0 : index
    %c0_13 = arith.constant 0 : index
    %c0_14 = arith.constant 0 : index
    %7 = vector.load %arg2[%c0_12, %c0_13, %c0_14] : memref<1x32x256xf32, #tpu.memory_space<vmem>>, vector<1x32x128xf32>
    %8 = arith.subf %7, %3 : vector<1x32x128xf32>
    %9 = arith.maximumf %6, %7 : vector<1x32x128xf32>
    %10 = arith.addf %4, %8 : vector<1x32x128xf32>
    %11 = arith.mulf %8, %8 : vector<1x32x128xf32>
    %12 = arith.addf %5, %11 : vector<1x32x128xf32>
    %c0_15 = arith.constant 0 : index
    %c0_16 = arith.constant 0 : index
    %c128 = arith.constant 128 : index
    %13 = vector.load %arg2[%c0_15, %c0_16, %c128] : memref<1x32x256xf32, #tpu.memory_space<vmem>>, vector<1x32x128xf32>
    %14 = arith.subf %13, %3 : vector<1x32x128xf32>
    %15 = arith.maximumf %9, %13 : vector<1x32x128xf32>
    %16 = arith.addf %10, %14 : vector<1x32x128xf32>
    %17 = arith.mulf %14, %14 : vector<1x32x128xf32>
    %18 = arith.addf %12, %17 : vector<1x32x128xf32>
    %c0_17 = arith.constant 0 : index
    %c0_18 = arith.constant 0 : index
    %c0_19 = arith.constant 0 : index
    %19 = vector.load %arg8[%c0_17, %c0_18, %c0_19] : memref<1x32x128xf32, #tpu.memory_space<vmem>>, vector<1x32x128xf32>
    tpu.vector_store %arg8[%c0_17, %c0_18, %c0_19], %16 {strides = array<i32>} : memref<1x32x128xf32, #tpu.memory_space<vmem>>, vector<1x32x128xf32>,
    %c0_20 = arith.constant 0 : index
    %c0_21 = arith.constant 0 : index
    %c0_22 = arith.constant 0 : index
    %20 = vector.load %arg9[%c0_20, %c0_21, %c0_22] : memref<1x32x128xf32, #tpu.memory_space<vmem>>, vector<1x32x128xf32>
    tpu.vector_store %arg9[%c0_20, %c0_21, %c0_22], %18 {strides = array<i32>} : memref<1x32x128xf32, #tpu.memory_space<vmem>>, vector<1x32x128xf32>,
    %c0_23 = arith.constant 0 : index
    %c0_24 = arith.constant 0 : index
    %c0_25 = arith.constant 0 : index
    %21 = vector.load %arg10[%c0_23, %c0_24, %c0_25] : memref<1x32x128xf32, #tpu.memory_space<vmem>>, vector<1x32x128xf32>
    tpu.vector_store %arg10[%c0_23, %c0_24, %c0_25], %15 {strides = array<i32>} : memref<1x32x128xf32, #tpu.memory_space<vmem>>, vector<1x32x128xf32>,
    %c0_i32_26 = arith.constant 0 : i32
    %22 = arith.cmpi eq, %arg1, %c0_i32_26 : i32
    %23 = arith.extui %22 : i1 to i32
    %c0_i32_27 = arith.constant 0 : i32
    %24 = arith.cmpi ne, %23, %c0_i32_27 : i32
    scf.if %24 {
      %c0_28 = arith.constant 0 : index
      %c0_29 = arith.constant 0 : index
      %c0_30 = arith.constant 0 : index
      %25 = vector.load %arg11[%c0_28, %c0_29, %c0_30] : memref<1x32x128xf32, #tpu.memory_space<vmem>>, vector<1x32x128xf32>
      %cst = arith.constant dense<0xFF800000> : vector<1x32xf32>
      %26 = vector.multi_reduction <maximumf>, %25, %cst [2] : vector<1x32x128xf32> to vector<1x32xf32>
      %c0_31 = arith.constant 0 : index
      %c0_32 = arith.constant 0 : index
      %c0_33 = arith.constant 0 : index
      %27 = vector.load %arg8[%c0_31, %c0_32, %c0_33] : memref<1x32x128xf32, #tpu.memory_space<vmem>>, vector<1x32x128xf32>
      %cst_34 = arith.constant dense<0.000000e+00> : vector<1x32xf32>
      %28 = vector.multi_reduction <add>, %27, %cst_34 [2] : vector<1x32x128xf32> to vector<1x32xf32>
      %c0_35 = arith.constant 0 : index
      %c0_36 = arith.constant 0 : index
      %c0_37 = arith.constant 0 : index
      %29 = vector.load %arg9[%c0_35, %c0_36, %c0_37] : memref<1x32x128xf32, #tpu.memory_space<vmem>>, vector<1x32x128xf32>
      %cst_38 = arith.constant dense<0.000000e+00> : vector<1x32xf32>
      %30 = vector.multi_reduction <add>, %29, %cst_38 [2] : vector<1x32x128xf32> to vector<1x32xf32>
      %c0_39 = arith.constant 0 : index
      %c0_40 = arith.constant 0 : index
      %c0_41 = arith.constant 0 : index
      %31 = vector.load %arg10[%c0_39, %c0_40, %c0_41] : memref<1x32x128xf32, #tpu.memory_space<vmem>>, vector<1x32x128xf32>
      %cst_42 = arith.constant dense<0xFF800000> : vector<1x32xf32>
      %32 = vector.multi_reduction <maximumf>, %31, %cst_42 [2] : vector<1x32x128xf32> to vector<1x32xf32>
      %cst_43 = arith.constant 2.560000e+02 : f32
      %33 = vector.broadcast %cst_43 : f32 to vector<1x32xf32>
      %34 = arith.divf %28, %33 : vector<1x32xf32>
      %35 = arith.addf %26, %34 : vector<1x32xf32>
      %cst_44 = arith.constant 2.560000e+02 : f32
      %36 = vector.broadcast %cst_44 : f32 to vector<1x32xf32>
      %37 = arith.divf %28, %36 : vector<1x32xf32>
      %38 = arith.mulf %28, %37 : vector<1x32xf32>
      %39 = arith.subf %30, %38 : vector<1x32xf32>
      %cst_45 = arith.constant 2.550000e+02 : f32
      %40 = vector.broadcast %cst_45 : f32 to vector<1x32xf32>
      %41 = arith.divf %39, %40 : vector<1x32xf32>
      %cst_46 = arith.constant 0.000000e+00 : f32
      %42 = vector.broadcast %cst_46 : f32 to vector<1x32xf32>
      %43 = arith.maximumf %41, %42 : vector<1x32xf32>
      %44 = math.sqrt %43 : vector<1x32xf32>
      %cst_47 = arith.constant 1.000000e-10 : f32
      %cst_48 = arith.constant 3.40282347E+38 : f32
      %45 = vector.broadcast %cst_47 : f32 to vector<1x32xf32>
      %46 = arith.maximumf %45, %44 : vector<1x32xf32>
      %47 = vector.broadcast %cst_48 : f32 to vector<1x32xf32>
      %48 = arith.minimumf %47, %46 : vector<1x32xf32>
      %c0_49 = arith.constant 0 : index
      %c0_50 = arith.constant 0 : index
      %49 = vector.load %arg3[%c0_49, %c0_50] : memref<96x2xf32, #tpu.memory_space<vmem>>, vector<96x2xf32>
      %50 = vector.extract_strided_slice %49 {offsets = [0, 0], sizes = [32, 2], strides = [1, 1]} : vector<96x2xf32> to vector<32x2xf32>
      %cst_51 = arith.constant dense<0.000000e+00> : vector<1x2xf32>
      %51 = tpu.matmul %35, %50, %cst_51 {dimension_numbers = #tpu.dot_dimension_numbers<[1], [0], [0], [1], [0, 0, 1, 1], [], []>} : vector<1x32xf32>, vector<32x2xf32>, vector<1x2xf32> -> vector<1x2xf32>
      %52 = vector.extract_strided_slice %49 {offsets = [32, 0], sizes = [32, 2], strides = [1, 1]} : vector<96x2xf32> to vector<32x2xf32>
      %cst_52 = arith.constant dense<0.000000e+00> : vector<1x2xf32>
      %53 = tpu.matmul %48, %52, %cst_52 {dimension_numbers = #tpu.dot_dimension_numbers<[1], [0], [0], [1], [0, 0, 1, 1], [], []>} : vector<1x32xf32>, vector<32x2xf32>, vector<1x2xf32> -> vector<1x2xf32>
      %54 = arith.addf %51, %53 : vector<1x2xf32>
      %55 = vector.extract_strided_slice %49 {offsets = [64, 0], sizes = [32, 2], strides = [1, 1]} : vector<96x2xf32> to vector<32x2xf32>
      %cst_53 = arith.constant dense<0.000000e+00> : vector<1x2xf32>
      %56 = tpu.matmul %32, %55, %cst_53 {dimension_numbers = #tpu.dot_dimension_numbers<[1], [0], [0], [1], [0, 0, 1, 1], [], []>} : vector<1x32xf32>, vector<32x2xf32>, vector<1x2xf32> -> vector<1x2xf32>
      %57 = arith.addf %54, %56 : vector<1x2xf32>
      %c0_54 = arith.constant 0 : index
      %c0_55 = arith.constant 0 : index
      %58 = vector.load %arg4[%c0_54, %c0_55] : memref<1x2xf32, #tpu.memory_space<vmem>>, vector<1x2xf32>
      %59 = arith.addf %57, %58 : vector<1x2xf32>
      %cst_56 = arith.constant 0.000000e+00 : f32
      %60 = vector.broadcast %cst_56 : f32 to vector<1x2xf32>
      %61 = arith.maximumf %59, %60 : vector<1x2xf32>
      %c0_57 = arith.constant 0 : index
      %c0_58 = arith.constant 0 : index
      %62 = vector.load %arg5[%c0_57, %c0_58] : memref<2x32xf32, #tpu.memory_space<vmem>>, vector<2x32xf32>
      %cst_59 = arith.constant dense<0.000000e+00> : vector<1x32xf32>
      %63 = tpu.matmul %61, %62, %cst_59 {dimension_numbers = #tpu.dot_dimension_numbers<[1], [0], [0], [1], [0, 0, 1, 1], [], []>} : vector<1x2xf32>, vector<2x32xf32>, vector<1x32xf32> -> vector<1x32xf32>
      %c0_60 = arith.constant 0 : index
      %c0_61 = arith.constant 0 : index
      %64 = vector.load %arg6[%c0_60, %c0_61] : memref<1x32xf32, #tpu.memory_space<vmem>>, vector<1x32xf32>
      %65 = arith.addf %63, %64 : vector<1x32xf32>
      %cst_62 = arith.constant 0.000000e+00 : f32
      %66 = vector.broadcast %cst_62 : f32 to vector<1x32xf32>
      %67 = arith.subf %66, %65 : vector<1x32xf32>
      %68 = math.exp %67 : vector<1x32xf32>
      %cst_63 = arith.constant 1.000000e+00 : f32
      %69 = vector.broadcast %cst_63 : f32 to vector<1x32xf32>
      %70 = arith.addf %69, %68 : vector<1x32xf32>
      %cst_64 = arith.constant 1.000000e+00 : f32
      %71 = vector.broadcast %cst_64 : f32 to vector<1x32xf32>
      %72 = arith.divf %71, %70 : vector<1x32xf32>
      %cst_65 = arith.constant 9.99999997E-7 : f32
      %cst_66 = arith.constant 3.40282347E+38 : f32
      %73 = vector.broadcast %cst_65 : f32 to vector<1x32xf32>
      %74 = arith.maximumf %73, %72 : vector<1x32xf32>
      %75 = vector.broadcast %cst_66 : f32 to vector<1x32xf32>
      %76 = arith.minimumf %75, %74 : vector<1x32xf32>
      %77 = vector.shape_cast %76 : vector<1x32xf32> to vector<1x1x32xf32>
      %c0_67 = arith.constant 0 : index
      %c0_68 = arith.constant 0 : index
      %c0_69 = arith.constant 0 : index
      %78 = vector.load %arg7[%c0_67, %c0_68, %c0_69] : memref<1x1x32xf32, #tpu.memory_space<vmem>>, vector<1x1x32xf32>
      tpu.vector_store %arg7[%c0_67, %c0_68, %c0_69], %77 {strides = array<i32>} : memref<1x1x32xf32, #tpu.memory_space<vmem>>, vector<1x1x32xf32>,
    } else {
    }
    return
  }
  func.func @transform_0(%arg0: i32, %arg1: i32) -> (i32, i32, i32) {
    %c0_i32 = arith.constant 0 : i32
    %c0_i32_0 = arith.constant 0 : i32
    return %arg0, %c0_i32, %arg1 : i32, i32, i32
  }
  func.func @transform_1(%arg0: i32, %arg1: i32) -> (i32, i32) {
    %c0_i32 = arith.constant 0 : i32
    %c0_i32_0 = arith.constant 0 : i32
    %c0_i32_1 = arith.constant 0 : i32
    return %c0_i32, %c0_i32_0 : i32, i32
  }
  func.func @transform_2(%arg0: i32, %arg1: i32) -> (i32, i32) {
    %c0_i32 = arith.constant 0 : i32
    %c0_i32_0 = arith.constant 0 : i32
    %c0_i32_1 = arith.constant 0 : i32
    return %c0_i32, %c0_i32_0 : i32, i32
  }
  func.func @transform_3(%arg0: i32, %arg1: i32) -> (i32, i32) {
    %c0_i32 = arith.constant 0 : i32
    %c0_i32_0 = arith.constant 0 : i32
    %c0_i32_1 = arith.constant 0 : i32
    return %c0_i32, %c0_i32_0 : i32, i32
  }
  func.func @transform_4(%arg0: i32, %arg1: i32) -> (i32, i32) {
    %c0_i32 = arith.constant 0 : i32
    %c0_i32_0 = arith.constant 0 : i32
    %c0_i32_1 = arith.constant 0 : i32
    return %c0_i32, %c0_i32_0 : i32, i32
  }
  func.func @transform_5(%arg0: i32, %arg1: i32) -> (i32, i32, i32) {
    %c0_i32 = arith.constant 0 : i32
    %c0_i32_0 = arith.constant 0 : i32
    %c0_i32_1 = arith.constant 0 : i32
    return %arg0, %c0_i32, %c0_i32_0 : i32, i32, i32
  }
}

</mosaic_0001>

<llo_original>
// kernel: tpu_custom_call.1
$region0: #{tpu_custom_call.1}
  #allocation0 [shape = 'u32[]', space=smem, size = 0x4, offset = 0x4, fixed_abs, tag = 'smem constant byte address 0x4 - core index']
  #allocation1 [shape = 'u32[72,128]{1,0:T(1,128)}', space=vmem, size = 0x9000, scoped, tag = 'internal scratch']
  #allocation2 [shape = 'f32[1,32,128]{2,1,0:T(8,128)}', space=vmem, size = 0x4000, scoped, tag = 'scratch operand']
  #allocation3 [shape = 'f32[1,32,128]{2,1,0:T(8,128)}', space=vmem, size = 0x4000, scoped, tag = 'scratch operand']
  #allocation4 [shape = 'f32[1,32,128]{2,1,0:T(8,128)}', space=vmem, size = 0x4000, scoped, tag = 'scratch operand']
  #allocation5 [shape = 'f32[1,32,128]{2,1,0:T(8,128)}', space=vmem, size = 0x4000, scoped, tag = 'scratch operand']
  %s0 = inlined_call_operand.hbm [shape: f32[2,32,256], index: 0, kind: input, shape index: {}]
  %s1 = inlined_call_operand.vmem [shape: f32[96,2], index: 1, kind: input, shape index: {}]
  %s2 = inlined_call_operand.vmem [shape: f32[1,2], index: 2, kind: input, shape index: {}]
  %s3 = inlined_call_operand.vmem [shape: f32[2,32], index: 3, kind: input, shape index: {}]
  %s4 = inlined_call_operand.vmem [shape: f32[1,32], index: 4, kind: input, shape index: {}]
  %s5 = inlined_call_operand.hbm [shape: f32[2,1,32], index: 5, kind: output, shape index: {}]
  %s6 = sld [smem:[#allocation0]]
  $region65: #{tpu_custom_call.1} parent=0
    _
  %s8 = ssub.s32 1, %s6
  %s9 = scalar_select 0, %s8, %s6
  $region1: #{tpu_custom_call.1} parent=0
    #allocation6 [shape = 'u8[65536]{0}', space=vmem, size = 0x10000, scoped, tag = 'input window, operand 0']
    #allocation7 [shape = 's32[2]{0}', space=sflag, size = 0x8, scoped, tag = 'scoped memory for tpu_custom_call.1']
    #allocation8 [shape = 's32[2]{0}', space=sflag, size = 0x8, scoped, tag = 'scoped memory for tpu_custom_call.1']
    #allocation9 [shape = 'u8[1024]{0}', space=vmem, size = 0x400, scoped, tag = 'output window, operand 0']
    %10 = vsyncpa [#allocation7], 0
    %s11 = scalar_lea.sflag [#allocation7], 1
    %12 = vsyncpa %s11, 0
    %13 = vsyncpa [#allocation8], 0
    %s14 = scalar_lea.sflag [#allocation8], 1
    %15 = vsyncpa %s14, 0
    loop: start=0, step=1, limit=4
    $region2: #{tpu_custom_call.1} parent=1 // loop_pre_header
      _
    $region3: #{tpu_custom_call.1} parent=1 // loop_header
      %s17 = sphi 0, %s21
      %p18 = scmp.ge.s32.totalorder %s17, 4
      %s24 = sphi 0, %s36
      %s25 = sphi 0, %s32
      %s26 = sphi 0, %s24
      %s27 = sphi 0, %s25
      %s28 = sphi 0, %s26
      %s29 = sphi 0, %s27
      %s41 = sphi 0, %s43
      %s44 = sphi 0, %s41
      %s45 = sphi 0, %s44
      %s61 = sphi 0, %s45
      %s65 = sphi 0, %s65
      %s67 = sphi 0, %s65
      %s68 = sphi 0, %s67
      %s82 = sphi 0, %s68
      %s86 = sphi 0, %s86
      %s88 = sphi 0, %s86
      %s89 = sphi 0, %s88
      %s103 = sphi 0, %s89
      %s107 = sphi 0, %s107
      %s109 = sphi 0, %s107
      %s110 = sphi 0, %s109
      %s124 = sphi 0, %s110
      %s128 = sphi 0, %s128
      %s130 = sphi 0, %s128
      %s131 = sphi 0, %s130
      %s145 = sphi 0, %s131
      %s151 = sphi 0, %s153
      %s154 = sphi 0, %s151
      %s155 = sphi 0, %s154
      %s171 = sphi 0, %s155
    $region4: #{tpu_custom_call.1} parent=1 // loop_header_branch
      %20 = sbr.rel (%p18) target = $region8
    $region5: #{tpu_custom_call.1} parent=1 // loop_body
      %s22 = ssub.s32 %s17, 1
      %s23 = ssub.s32 %s17, 2
      %s30 = sadd.s32 1, %s25
      %p31 = scmp.ge.s32.totalorder %s30, 1
      %s32 = scalar_select %p31, 0, %s30
      %s33 = sadd.s32 1, %s24
      %s34 = scalar_select %p31, %s33, %s24
      %p35 = scmp.ge.s32.totalorder %s34, 2
      %s36 = scalar_select %p35, 0, %s34
      %s37 = ssub.s32 %s24, %s36
      %s38 = ssub.s32 %s25, %s32
      %s39 = sor.u32 %s37, %s38
      %p40 = scmp.eq.s32.totalorder %s39, 0
      %s42 = sadd.s32 %s41, 1
      %s43 = scalar_select %p40, %s41, %s42
      %p46 = pneg %p40
      %p47 = scmp.eq.s32.totalorder %s17, 1
      %p48 = por %p46, %p47
      %p49 = scmp.ne.s32.totalorder %s41, %s44
      %p50 = scmp.eq.s32.totalorder %s17, 0
      %p51 = por %p49, %p50
      %p52 = scmp.ne.s32.totalorder %s41, %s44
      %p53 = scmp.eq.s32.totalorder %s22, 1
      %p54 = por %p52, %p53
      %p55 = scmp.ne.s32.totalorder %s44, %s45
      %p56 = scmp.eq.s32.totalorder %s22, 0
      %p57 = por %p55, %p56
      %p58 = scmp.ne.s32.totalorder %s44, %s45
      %p59 = scmp.eq.s32.totalorder %s23, 1
      %p60 = por %p58, %p59
      %p62 = scmp.ne.s32.totalorder %s45, %s61
      %p63 = scmp.eq.s32.totalorder %s23, 0
      %p64 = por %p62, %p63
      %s66 = sadd.s32 %s65, 1
      %p69 = scmp.eq.s32.totalorder %s17, 1
      %p70 = scmp.ne.s32.totalorder %s65, %s67
      %p71 = scmp.eq.s32.totalorder %s17, 0
      %p72 = por %p70, %p71
      %p73 = scmp.ne.s32.totalorder %s65, %s67
      %p74 = scmp.eq.s32.totalorder %s22, 1
      %p75 = por %p73, %p74
      %p76 = scmp.ne.s32.totalorder %s67, %s68
      %p77 = scmp.eq.s32.totalorder %s22, 0
      %p78 = por %p76, %p77
      %p79 = scmp.ne.s32.totalorder %s67, %s68
      %p80 = scmp.eq.s32.totalorder %s23, 1
      %p81 = por %p79, %p80
      %p83 = scmp.ne.s32.totalorder %s68, %s82
      %p84 = scmp.eq.s32.totalorder %s23, 0
      %p85 = por %p83, %p84
      %s87 = sadd.s32 %s86, 1
      %p90 = scmp.eq.s32.totalorder %s17, 1
      %p91 = scmp.ne.s32.totalorder %s86, %s88
      %p92 = scmp.eq.s32.totalorder %s17, 0
      %p93 = por %p91, %p92
      %p94 = scmp.ne.s32.totalorder %s86, %s88
      %p95 = scmp.eq.s32.totalorder %s22, 1
      %p96 = por %p94, %p95
      %p97 = scmp.ne.s32.totalorder %s88, %s89
      %p98 = scmp.eq.s32.totalorder %s22, 0
      %p99 = por %p97, %p98
      %p100 = scmp.ne.s32.totalorder %s88, %s89
      %p101 = scmp.eq.s32.totalorder %s23, 1
      %p102 = por %p100, %p101
      %p104 = scmp.ne.s32.totalorder %s89, %s103
      %p105 = scmp.eq.s32.totalorder %s23, 0
      %p106 = por %p104, %p105
      %s108 = sadd.s32 %s107, 1
      %p111 = scmp.eq.s32.totalorder %s17, 1
      %p112 = scmp.ne.s32.totalorder %s107, %s109
      %p113 = scmp.eq.s32.totalorder %s17, 0
      %p114 = por %p112, %p113
      %p115 = scmp.ne.s32.totalorder %s107, %s109
      %p116 = scmp.eq.s32.totalorder %s22, 1
      %p117 = por %p115, %p116
      %p118 = scmp.ne.s32.totalorder %s109, %s110
      %p119 = scmp.eq.s32.totalorder %s22, 0
      %p120 = por %p118, %p119
      %p121 = scmp.ne.s32.totalorder %s109, %s110
      %p122 = scmp.eq.s32.totalorder %s23, 1
      %p123 = por %p121, %p122
      %p125 = scmp.ne.s32.totalorder %s110, %s124
      %p126 = scmp.eq.s32.totalorder %s23, 0
      %p127 = por %p125, %p126
      %s129 = sadd.s32 %s128, 1
      %p132 = scmp.eq.s32.totalorder %s17, 1
      %p133 = scmp.ne.s32.totalorder %s128, %s130
      %p134 = scmp.eq.s32.totalorder %s17, 0
      %p135 = por %p133, %p134
      %p136 = scmp.ne.s32.totalorder %s128, %s130
      %p137 = scmp.eq.s32.totalorder %s22, 1
      %p138 = por %p136, %p137
      %p139 = scmp.ne.s32.totalorder %s130, %s131
      %p140 = scmp.eq.s32.totalorder %s22, 0
      %p141 = por %p139, %p140
      %p142 = scmp.ne.s32.totalorder %s130, %s131
      %p143 = scmp.eq.s32.totalorder %s23, 1
      %p144 = por %p142, %p143
      %p146 = scmp.ne.s32.totalorder %s131, %s145
      %p147 = scmp.eq.s32.totalorder %s23, 0
      %p148 = por %p146, %p147
      %s149 = ssub.s32 %s24, %s36
      %p150 = scmp.eq.s32.totalorder %s149, 0
      %s152 = sadd.s32 %s151, 1
      %s153 = scalar_select %p150, %s151, %s152
      %p156 = pneg %p150
      %p157 = scmp.eq.s32.totalorder %s17, 1
      %p158 = por %p156, %p157
      %p159 = scmp.ne.s32.totalorder %s151, %s154
      %p160 = scmp.eq.s32.totalorder %s17, 0
      %p161 = por %p159, %p160
      %p162 = scmp.ne.s32.totalorder %s151, %s154
      %p163 = scmp.eq.s32.totalorder %s22, 1
      %p164 = por %p162, %p163
      %p165 = scmp.ne.s32.totalorder %s154, %s155
      %p166 = scmp.eq.s32.totalorder %s22, 0
      %p167 = por %p165, %p166
      %p168 = scmp.ne.s32.totalorder %s154, %s155
      %p169 = scmp.eq.s32.totalorder %s23, 1
      %p170 = por %p168, %p169
      %p172 = scmp.ne.s32.totalorder %s155, %s171
      %p173 = scmp.eq.s32.totalorder %s23, 0
      %p174 = por %p172, %p173
      %p175 = scmp.le.s32.totalorder 1, %s17
      %p176 = scmp.lt.s32.totalorder %s17, 3
      %p177 = pnand %p175, %p176
      %p178 = pneg %p177
      // Predicated region
      $region9: #{tpu_custom_call.1} parent=5 // pred_check
        _
      $region10: #{tpu_custom_call.1} parent=5 // pred_check_branch
        %180 = sbr.rel (%p177) target = $region12
      $region11: #{tpu_custom_call.1} parent=5 // pred_region
        %s181 = ssub.s32 %s17, 1
        // Predicated region
        $region13: #{tpu_custom_call.1} parent=11 // pred_check
          %p182 = pneg %p78
        $region14: #{tpu_custom_call.1} parent=11 // pred_check_branch
          %184 = sbr.rel (%p182) target = $region16
        $region15: #{tpu_custom_call.1} parent=11 // pred_region
          _
        $region16: #{tpu_custom_call.1} parent=11 // pred_fallthru
          _
        // Predicated region
        $region17: #{tpu_custom_call.1} parent=11 // pred_check
          %p185 = pneg %p99
        $region18: #{tpu_custom_call.1} parent=11 // pred_check_branch
          %187 = sbr.rel (%p185) target = $region20
        $region19: #{tpu_custom_call.1} parent=11 // pred_region
          _
        $region20: #{tpu_custom_call.1} parent=11 // pred_fallthru
          _
        // Predicated region
        $region21: #{tpu_custom_call.1} parent=11 // pred_check
          %p188 = pneg %p120
        $region22: #{tpu_custom_call.1} parent=11 // pred_check_branch
          %190 = sbr.rel (%p188) target = $region24
        $region23: #{tpu_custom_call.1} parent=11 // pred_region
          _
        $region24: #{tpu_custom_call.1} parent=11 // pred_fallthru
          _
        // Predicated region
        $region25: #{tpu_custom_call.1} parent=11 // pred_check
          %p191 = pneg %p141
        $region26: #{tpu_custom_call.1} parent=11 // pred_check_branch
          %193 = sbr.rel (%p191) target = $region28
        $region27: #{tpu_custom_call.1} parent=11 // pred_region
          _
        $region28: #{tpu_custom_call.1} parent=11 // pred_fallthru
          _
      $region12: #{tpu_custom_call.1} parent=5 // pred_fallthru
        _
      %p194 = scmp.lt.s32.totalorder %s17, 2
      // Predicated region
      $region29: #{tpu_custom_call.1} parent=5 // pred_check
        %p195 = pneg %p194
      $region30: #{tpu_custom_call.1} parent=5 // pred_check_branch
        %197 = sbr.rel (%p195) target = $region32
      $region31: #{tpu_custom_call.1} parent=5 // pred_region
        // Predicated region
        $region33: #{tpu_custom_call.1} parent=31 // pred_check
          %p198 = pneg %p51
        $region34: #{tpu_custom_call.1} parent=31 // pred_check_branch
          %200 = sbr.rel (%p198) target = $region36
        $region35: #{tpu_custom_call.1} parent=31 // pred_region
          %s201 = sand.u32 %s41, 1
          %s202 = scalar_lea.sflag [#allocation7], %s201
          %s203 = sand.u32 %s41, 1
          %s204 = smul.addr %s203, 64
          %s205 = scalar_lea.vmem [#allocation6], %s204
          %s206 = smul.u32 2, %s25
          %208 = vsyncadd %s202, 0
          %s209 = smul.addr %s24, 8
          %s210 = sadd.s32 %s206, %s209
          %s211 = smul.addr %s210, 8
          %s212 = scalar_lea.hbm %s0, %s211
          %s213 = sshll.u32 %s212, 4
          %s214 = int_to_ptr.hbm [resolvable:$true] %s213
          %s215 = sshll.u32 %s205, 4
          %s216 = int_to_ptr.vmem [resolvable:$true] %s215
          %221 = dma.hbm_to_vmem [thread:$0]  %s214, 1024, %s216, %s202, 256, 256, 16
        $region36: #{tpu_custom_call.1} parent=31 // pred_fallthru
          _
      $region32: #{tpu_custom_call.1} parent=5 // pred_fallthru
        _
      %p222 = scmp.le.s32.totalorder 1, %s17
      %p223 = scmp.lt.s32.totalorder %s17, 3
      %p224 = pnand %p222, %p223
      %p225 = pneg %p224
      // Predicated region
      $region37: #{tpu_custom_call.1} parent=5 // pred_check
        _
      $region38: #{tpu_custom_call.1} parent=5 // pred_check_branch
        %227 = sbr.rel (%p224) target = $region40
      $region39: #{tpu_custom_call.1} parent=5 // pred_region
        %s228 = ssub.s32 %s17, 1
        %s229 = sand.u32 %s44, 1
        %s230 = scalar_lea.sflag [#allocation7], %s229
        %s231 = sand.u32 %s44, 1
        %s232 = smul.addr %s231, 64
        %s233 = scalar_lea.vmem [#allocation6], %s232
        // Predicated region
        $region41: #{tpu_custom_call.1} parent=39 // pred_check
          %p234 = pneg %p57
        $region42: #{tpu_custom_call.1} parent=39 // pred_check_branch
          %236 = sbr.rel (%p234) target = $region44
        $region43: #{tpu_custom_call.1} parent=39 // pred_region
          %238 = dma.done %s230, 1024
        $region44: #{tpu_custom_call.1} parent=39 // pred_fallthru
          _
        %s239 = sand.u32 %s44, 1
        %s240 = scalar_lea.sflag [#allocation7], %s239
        %s241 = sand.u32 %s44, 1
        %s242 = smul.addr %s241, 64
        %s243 = scalar_lea.vmem [#allocation6], %s242
        %p244 = pneg %p57
        %p245 = pneg %p54
        %p246 = pneg %p78
        %p247 = pneg %p75
        %p248 = pneg %p99
        %p249 = pneg %p96
        %p250 = pneg %p120
        %p251 = pneg %p117
        %p252 = pneg %p141
        %p253 = pneg %p138
        %p254 = pneg %p167
        %p255 = pneg %p164
        %s256 = sand.u32 %s154, 1
        %s257 = scalar_lea.sflag [#allocation8], %s256
        %s258 = sand.u32 %s154, 1
        %s259 = scalar_lea.vmem [#allocation9], %s258
        %s260 = smul.u32 2, %s27
        %p261 = scmp.eq.s32.totalorder %s27, 0
        // Predicated region
        $region45: #{tpu_custom_call.1} parent=39 // pred_check
          %p262 = pneg %p261
        $region46: #{tpu_custom_call.1} parent=39 // pred_check_branch
          %264 = sbr.rel (%p262) target = $region48
        $region47: #{tpu_custom_call.1} parent=39 // pred_region
          %v265 = vld [vmem:[%s233] sm:$0xff]
          %v266 = vld [vmem:[%s233 + $0x10] sm:$0xff]
          %v267 = vld [vmem:[%s233 + $0x20] sm:$0xff]
          %v268 = vld [vmem:[%s233 + $0x30] sm:$0xff]
          %269 = vadd.xlane.f32.xlu0 %v265
          %v270 = vpop.xlane.xlu0 %269
          %271 = vadd.xlane.f32.xlu0 %v266
          %v272 = vpop.xlane.xlu0 %271
          %273 = vadd.xlane.f32.xlu0 %v267
          %v274 = vpop.xlane.xlu0 %273
          %275 = vadd.xlane.f32.xlu0 %v268
          %v276 = vpop.xlane.xlu0 %275
          %v277 = vrcp.pop 128.0
          %v278 = vmul.f32 128.0, %v277
          %v279 = vsub.f32 1.0, %v278
          %v280 = vmul.f32 %v277, %v279
          %v281 = vadd.f32 %v277, %v280
          %vm282 = vweird.f32 %v277
          %v283 = vsel %vm282, %v277, %v281
          %v284 = vmul.f32 %v270, %v283
          %v285 = vmul.f32 %v272, %v283
          %v286 = vmul.f32 %v274, %v283
          %v287 = vmul.f32 %v276, %v283
          %288 = vst [vmem:[#allocation5] sm:$0xff] %v284
          %289 = vst [vmem:[#allocation5 + $0x8] sm:$0xff] %v285
          %290 = vst [vmem:[#allocation5 + $0x10] sm:$0xff] %v286
          %291 = vst [vmem:[#allocation5 + $0x18] sm:$0xff] %v287
          %292 = vst [vmem:[#allocation2] sm:$0xff] 0.0
          %293 = vst [vmem:[#allocation2 + $0x8] sm:$0xff] 0.0
          %294 = vst [vmem:[#allocation2 + $0x10] sm:$0xff] 0.0
          %295 = vst [vmem:[#allocation2 + $0x18] sm:$0xff] 0.0
          %296 = vst [vmem:[#allocation3] sm:$0xff] 0.0
          %297 = vst [vmem:[#allocation3 + $0x8] sm:$0xff] 0.0
          %298 = vst [vmem:[#allocation3 + $0x10] sm:$0xff] 0.0
          %299 = vst [vmem:[#allocation3 + $0x18] sm:$0xff] 0.0
          %300 = vst [vmem:[#allocation4] sm:$0xff] -inf
          %301 = vst [vmem:[#allocation4 + $0x8] sm:$0xff] -inf
          %302 = vst [vmem:[#allocation4 + $0x10] sm:$0xff] -inf
          %303 = vst [vmem:[#allocation4 + $0x18] sm:$0xff] -inf
        $region48: #{tpu_custom_call.1} parent=39 // pred_fallthru
          _
        %v304 = vld [vmem:[#allocation5] sm:$0xff]
        %v305 = vld [vmem:[#allocation5 + $0x8] sm:$0xff]
        %v306 = vld [vmem:[#allocation5 + $0x10] sm:$0xff]
        %v307 = vld [vmem:[#allocation5 + $0x18] sm:$0xff]
        %v308 = vld [vmem:[#allocation2] sm:$0xff]
        %v309 = vld [vmem:[#allocation2 + $0x8] sm:$0xff]
        %v310 = vld [vmem:[#allocation2 + $0x10] sm:$0xff]
        %v311 = vld [vmem:[#allocation2 + $0x18] sm:$0xff]
        %v312 = vld [vmem:[#allocation3] sm:$0xff]
        %v313 = vld [vmem:[#allocation3 + $0x8] sm:$0xff]
        %v314 = vld [vmem:[#allocation3 + $0x10] sm:$0xff]
        %v315 = vld [vmem:[#allocation3 + $0x18] sm:$0xff]
        %v316 = vld [vmem:[#allocation4] sm:$0xff]
        %v317 = vld [vmem:[#allocation4 + $0x8] sm:$0xff]
        %v318 = vld [vmem:[#allocation4 + $0x10] sm:$0xff]
        %v319 = vld [vmem:[#allocation4 + $0x18] sm:$0xff]
        %v320 = vld [vmem:[%s233] sm:$0xff]
        %v321 = vld [vmem:[%s233 + $0x10] sm:$0xff]
        %v322 = vld [vmem:[%s233 + $0x20] sm:$0xff]
        %v323 = vld [vmem:[%s233 + $0x30] sm:$0xff]
        %v324 = vsub.f32 %v320, %v304
        %v325 = vsub.f32 %v321, %v305
        %v326 = vsub.f32 %v322, %v306
        %v327 = vsub.f32 %v323, %v307
        %v328 = vmax.f32 %v316, %v320
        %v329 = vmax.f32 %v317, %v321
        %v330 = vmax.f32 %v318, %v322
        %v331 = vmax.f32 %v319, %v323
        %v332 = vadd.f32 %v308, %v324
        %v333 = vadd.f32 %v309, %v325
        %v334 = vadd.f32 %v310, %v326
        %v335 = vadd.f32 %v311, %v327
        %v336 = vmul.f32 %v324, %v324
        %v337 = vmul.f32 %v325, %v325
        %v338 = vmul.f32 %v326, %v326
        %v339 = vmul.f32 %v327, %v327
        %v340 = vadd.f32 %v312, %v336
        %v341 = vadd.f32 %v313, %v337
        %v342 = vadd.f32 %v314, %v338
        %v343 = vadd.f32 %v315, %v339
        %v344 = vld [vmem:[%s233 + $0x8] sm:$0xff]
        %v345 = vld [vmem:[%s233 + $0x18] sm:$0xff]
        %v346 = vld [vmem:[%s233 + $0x28] sm:$0xff]
        %v347 = vld [vmem:[%s233 + $0x38] sm:$0xff]
        %v348 = vsub.f32 %v344, %v304
        %v349 = vsub.f32 %v345, %v305
        %v350 = vsub.f32 %v346, %v306
        %v351 = vsub.f32 %v347, %v307
        %v352 = vmax.f32 %v328, %v344
        %v353 = vmax.f32 %v329, %v345
        %v354 = vmax.f32 %v330, %v346
        %v355 = vmax.f32 %v331, %v347
        %v356 = vadd.f32 %v332, %v348
        %v357 = vadd.f32 %v333, %v349
        %v358 = vadd.f32 %v334, %v350
        %v359 = vadd.f32 %v335, %v351
        %v360 = vmul.f32 %v348, %v348
        %v361 = vmul.f32 %v349, %v349
        %v362 = vmul.f32 %v350, %v350
        %v363 = vmul.f32 %v351, %v351
        %v364 = vadd.f32 %v340, %v360
        %v365 = vadd.f32 %v341, %v361
        %v366 = vadd.f32 %v342, %v362
        %v367 = vadd.f32 %v343, %v363
        %368 = vst [vmem:[#allocation2] sm:$0xff] %v356
        %369 = vst [vmem:[#allocation2 + $0x8] sm:$0xff] %v357
        %370 = vst [vmem:[#allocation2 + $0x10] sm:$0xff] %v358
        %371 = vst [vmem:[#allocation2 + $0x18] sm:$0xff] %v359
        %372 = vst [vmem:[#allocation3] sm:$0xff] %v364
        %373 = vst [vmem:[#allocation3 + $0x8] sm:$0xff] %v365
        %374 = vst [vmem:[#allocation3 + $0x10] sm:$0xff] %v366
        %375 = vst [vmem:[#allocation3 + $0x18] sm:$0xff] %v367
        %376 = vst [vmem:[#allocation4] sm:$0xff] %v352
        %377 = vst [vmem:[#allocation4 + $0x8] sm:$0xff] %v353
        %378 = vst [vmem:[#allocation4 + $0x10] sm:$0xff] %v354
        %379 = vst [vmem:[#allocation4 + $0x18] sm:$0xff] %v355
        // Predicated region
        $region49: #{tpu_custom_call.1} parent=39 // pred_check
          %p380 = pneg %p261
        $region50: #{tpu_custom_call.1} parent=39 // pred_check_branch
          %382 = sbr.rel (%p380) target = $region52
        $region51: #{tpu_custom_call.1} parent=39 // pred_region
          %v383 = vld [vmem:[#allocation5] sm:$0xff]
          %v384 = vld [vmem:[#allocation5 + $0x8] sm:$0xff]
          %v385 = vld [vmem:[#allocation5 + $0x10] sm:$0xff]
          %v386 = vld [vmem:[#allocation5 + $0x18] sm:$0xff]
          %387 = vmax.xlane.f32.xlu0 %v383
          %v388 = vpop.xlane.xlu0 %387
          %389 = vmax.xlane.f32.xlu0 %v384
          %v390 = vpop.xlane.xlu0 %389
          %391 = vmax.xlane.f32.xlu0 %v385
          %v392 = vpop.xlane.xlu0 %391
          %393 = vmax.xlane.f32.xlu0 %v386
          %v394 = vpop.xlane.xlu0 %393
          %v395 = vld [vmem:[#allocation2] sm:$0xff]
          %v396 = vld [vmem:[#allocation2 + $0x8] sm:$0xff]
          %v397 = vld [vmem:[#allocation2 + $0x10] sm:$0xff]
          %v398 = vld [vmem:[#allocation2 + $0x18] sm:$0xff]
          %399 = vadd.xlane.f32.xlu0 %v395
          %v400 = vpop.xlane.xlu0 %399
          %401 = vadd.xlane.f32.xlu0 %v396
          %v402 = vpop.xlane.xlu0 %401
          %403 = vadd.xlane.f32.xlu0 %v397
          %v404 = vpop.xlane.xlu0 %403
          %405 = vadd.xlane.f32.xlu0 %v398
          %v406 = vpop.xlane.xlu0 %405
          %v407 = vld [vmem:[#allocation3] sm:$0xff]
          %v408 = vld [vmem:[#allocation3 + $0x8] sm:$0xff]
          %v409 = vld [vmem:[#allocation3 + $0x10] sm:$0xff]
          %v410 = vld [vmem:[#allocation3 + $0x18] sm:$0xff]
          %411 = vadd.xlane.f32.xlu0 %v407
          %v412 = vpop.xlane.xlu0 %411
          %413 = vadd.xlane.f32.xlu0 %v408
          %v414 = vpop.xlane.xlu0 %413
          %415 = vadd.xlane.f32.xlu0 %v409
          %v416 = vpop.xlane.xlu0 %415
          %417 = vadd.xlane.f32.xlu0 %v410
          %v418 = vpop.xlane.xlu0 %417
          %v419 = vld [vmem:[#allocation4] sm:$0xff]
          %v420 = vld [vmem:[#allocation4 + $0x8] sm:$0xff]
          %v421 = vld [vmem:[#allocation4 + $0x10] sm:$0xff]
          %v422 = vld [vmem:[#allocation4 + $0x18] sm:$0xff]
          %423 = vmax.xlane.f32.xlu0 %v419
          %v424 = vpop.xlane.xlu0 %423
          %425 = vmax.xlane.f32.xlu0 %v420
          %v426 = vpop.xlane.xlu0 %425
          %427 = vmax.xlane.f32.xlu0 %v421
          %v428 = vpop.xlane.xlu0 %427
          %429 = vmax.xlane.f32.xlu0 %v422
          %v430 = vpop.xlane.xlu0 %429
          %v431 = vrcp.pop 256.0
          %v432 = vmul.f32 256.0, %v431
          %v433 = vsub.f32 1.0, %v432
          %v434 = vmul.f32 %v431, %v433
          %v435 = vadd.f32 %v431, %v434
          %vm436 = vweird.f32 %v431
          %v437 = vsel %vm436, %v431, %v435
          %v438 = vmul.f32 %v400, %v437
          %v439 = vmul.f32 %v402, %v437
          %v440 = vmul.f32 %v404, %v437
          %v441 = vmul.f32 %v406, %v437
          %v442 = vadd.f32 %v388, %v438
          %v443 = vadd.f32 %v390, %v439
          %v444 = vadd.f32 %v392, %v440
          %v445 = vadd.f32 %v394, %v441
          %v446 = vmul.f32 %v400, %v438
          %v447 = vmul.f32 %v402, %v439
          %v448 = vmul.f32 %v404, %v440
          %v449 = vmul.f32 %v406, %v441
          %v450 = vsub.f32 %v412, %v446
          %v451 = vsub.f32 %v414, %v447
          %v452 = vsub.f32 %v416, %v448
          %v453 = vsub.f32 %v418, %v449
          %v454 = vrcp.pop 255.0
          %v455 = vmul.f32 255.0, %v454
          %v456 = vsub.f32 1.0, %v455
          %v457 = vmul.f32 %v454, %v456
          %v458 = vadd.f32 %v454, %v457
          %vm459 = vweird.f32 %v454
          %v460 = vsel %vm459, %v454, %v458
          %v461 = vmul.f32 %v450, %v460
          %v462 = vmul.f32 %v451, %v460
          %v463 = vmul.f32 %v452, %v460
          %v464 = vmul.f32 %v453, %v460
          %v465 = vmax.f32 %v461, 0.0
          %v466 = vmax.f32 %v462, 0.0
          %v467 = vmax.f32 %v463, 0.0
          %v468 = vmax.f32 %v464, 0.0
          %v469 = vrsqrt.pop %v465
          %v470 = vmul.f32 %v469, %v465
          %v471 = vmul.f32 %v470, %v469
          %v472 = vmul.f32 0.5, %v471
          %v473 = vsub.f32 1.5, %v472
          %v474 = vmul.f32 %v469, %v473
          %v475 = vmul.f32 %v465, %v474
          %vm476 = vcmp.eq.f32.partialorder %v465, inf
          %v477 = vsel %vm476, %v465, %v475
          %vm478 = vcmp.eq.f32.partialorder %v465, 0.0
          %v479 = vand.u32 %v465, 2147483648
          %v480 = vsel %vm478, %v479, %v477
          %v481 = vrsqrt.pop %v466
          %v482 = vmul.f32 %v481, %v466
          %v483 = vmul.f32 %v482, %v481
          %v484 = vmul.f32 0.5, %v483
          %v485 = vsub.f32 1.5, %v484
          %v486 = vmul.f32 %v481, %v485
          %v487 = vmul.f32 %v466, %v486
          %vm488 = vcmp.eq.f32.partialorder %v466, inf
          %v489 = vsel %vm488, %v466, %v487
          %vm490 = vcmp.eq.f32.partialorder %v466, 0.0
          %v491 = vand.u32 %v466, 2147483648
          %v492 = vsel %vm490, %v491, %v489
          %v493 = vrsqrt.pop %v467
          %v494 = vmul.f32 %v493, %v467
          %v495 = vmul.f32 %v494, %v493
          %v496 = vmul.f32 0.5, %v495
          %v497 = vsub.f32 1.5, %v496
          %v498 = vmul.f32 %v493, %v497
          %v499 = vmul.f32 %v467, %v498
          %vm500 = vcmp.eq.f32.partialorder %v467, inf
          %v501 = vsel %vm500, %v467, %v499
          %vm502 = vcmp.eq.f32.partialorder %v467, 0.0
          %v503 = vand.u32 %v467, 2147483648
          %v504 = vsel %vm502, %v503, %v501
          %v505 = vrsqrt.pop %v468
          %v506 = vmul.f32 %v505, %v468
          %v507 = vmul.f32 %v506, %v505
          %v508 = vmul.f32 0.5, %v507
          %v509 = vsub.f32 1.5, %v508
          %v510 = vmul.f32 %v505, %v509
          %v511 = vmul.f32 %v468, %v510
          %vm512 = vcmp.eq.f32.partialorder %v468, inf
          %v513 = vsel %vm512, %v468, %v511
          %vm514 = vcmp.eq.f32.partialorder %v468, 0.0
          %v515 = vand.u32 %v468, 2147483648
          %v516 = vsel %vm514, %v515, %v513
          %v517 = vmax.f32 %v480, 1e-10
          %v518 = vmax.f32 %v492, 1e-10
          %v519 = vmax.f32 %v504, 1e-10
          %v520 = vmax.f32 %v516, 1e-10
          %v521 = vmin.f32 %v517, 3.4028235e+38
          %v522 = vmin.f32 %v518, 3.4028235e+38
          %v523 = vmin.f32 %v519, 3.4028235e+38
          %v524 = vmin.f32 %v520, 3.4028235e+38
          %v525 = vld [vmem:[%s1] sm:$0xff]
          %v526 = vld [vmem:[%s1 + $0x8] sm:$0xff]
          %v527 = vld [vmem:[%s1 + $0x10] sm:$0xff]
          %v528 = vld [vmem:[%s1 + $0x18] sm:$0xff]
          %v529 = vld [vmem:[%s1 + $0x20] sm:$0xff]
          %v530 = vld [vmem:[%s1 + $0x28] sm:$0xff]
          %v531 = vld [vmem:[%s1 + $0x30] sm:$0xff]
          %v532 = vld [vmem:[%s1 + $0x38] sm:$0xff]
          %v533 = vld [vmem:[%s1 + $0x40] sm:$0xff]
          %v534 = vld [vmem:[%s1 + $0x48] sm:$0xff]
          %v535 = vld [vmem:[%s1 + $0x50] sm:$0xff]
          %v536 = vld [vmem:[%s1 + $0x58] sm:$0xff]
          %v541 = vlaneseq
          %v542 = vand.u32 %v541, 127
          %v543 = vperm.slane %v521, %v542
          %v544 = vadd.s32 %v542, 4294967288
          %v545 = vperm.slane %v522, %v544
          %vm546 = vcmask 130112
          %v547 = vsel %vm546, %v545, %v543
          %v548 = vadd.s32 %v542, 4294967280
          %v549 = vperm.slane %v523, %v548
          %vm550 = vcmask 195712
          %v551 = vsel %vm550, %v549, %v547
          %v552 = vadd.s32 %v542, 4294967272
          %v553 = vperm.slane %v524, %v552
          %vm554 = vcmask 261312
          %v555 = vsel %vm554, %v553, %v551
          %vm556 = vcmask 261120
          %v557 = vsel %vm556, %v555, 0
          %559 = vmatpush.msra.mxu0 0.0
          %560 = vmatpush.msra.mxu0 0.0
          %561 = vmatpush.msra.mxu0 0.0
          %562 = vmatpush.msra.mxu0 0.0
          %563 = vmatpush.msra.mxu0 0.0
          %564 = vmatpush.msra.mxu0 0.0
          %565 = vmatpush.msra.mxu0 0.0
          %566 = vmatpush.msra.mxu0 0.0
          %567 = vmatpush.msra.mxu0 0.0
          %568 = vmatpush.msra.mxu0 0.0
          %569 = vmatpush.msra.mxu0 0.0
          %570 = vmatpush.msra.mxu0 0.0
          %571 = vmatpush.msra.mxu0 %v532
          %572 = vmatpush.msra.mxu0 %v531
          %573 = vmatpush.msra.mxu0 %v530
          %574 = vmatpush.msra.mxu0 %v529
          %575 = vmatmul.f32.gmra.mxu0 %v557
          %v576 = vpop.f32.mrf.mxu0
          %v577 = vadd.f32 0.0, %v576
          %578 = vdwg.mxu0
          %v583 = vperm.slane %v442, %v542
          %v584 = vperm.slane %v443, %v544
          %v585 = vsel %vm546, %v584, %v583
          %v586 = vperm.slane %v444, %v548
          %v587 = vsel %vm550, %v586, %v585
          %v588 = vperm.slane %v445, %v552
          %v589 = vsel %vm554, %v588, %v587
          %v590 = vsel %vm556, %v589, 0
          %592 = vmatpush.msra.mxu0 0.0
          %593 = vmatpush.msra.mxu0 0.0
          %594 = vmatpush.msra.mxu0 0.0
          %595 = vmatpush.msra.mxu0 0.0
          %596 = vmatpush.msra.mxu0 0.0
          %597 = vmatpush.msra.mxu0 0.0
          %598 = vmatpush.msra.mxu0 0.0
          %599 = vmatpush.msra.mxu0 0.0
          %600 = vmatpush.msra.mxu0 0.0
          %601 = vmatpush.msra.mxu0 0.0
          %602 = vmatpush.msra.mxu0 0.0
          %603 = vmatpush.msra.mxu0 0.0
          %604 = vmatpush.msra.mxu0 %v528
          %605 = vmatpush.msra.mxu0 %v527
          %606 = vmatpush.msra.mxu0 %v526
          %607 = vmatpush.msra.mxu0 %v525
          %608 = vmatmul.f32.gmra.mxu0 %v590
          %v609 = vpop.f32.mrf.mxu0
          %v610 = vadd.f32 %v577, %v609
          %611 = vdwg.mxu0
          %v616 = vperm.slane %v424, %v542
          %v617 = vperm.slane %v426, %v544
          %v618 = vsel %vm546, %v617, %v616
          %v619 = vperm.slane %v428, %v548
          %v620 = vsel %vm550, %v619, %v618
          %v621 = vperm.slane %v430, %v552
          %v622 = vsel %vm554, %v621, %v620
          %v623 = vsel %vm556, %v622, 0
          %625 = vmatpush.msra.mxu0 0.0
          %626 = vmatpush.msra.mxu0 0.0
          %627 = vmatpush.msra.mxu0 0.0
          %628 = vmatpush.msra.mxu0 0.0
          %629 = vmatpush.msra.mxu0 0.0
          %630 = vmatpush.msra.mxu0 0.0
          %631 = vmatpush.msra.mxu0 0.0
          %632 = vmatpush.msra.mxu0 0.0
          %633 = vmatpush.msra.mxu0 0.0
          %634 = vmatpush.msra.mxu0 0.0
          %635 = vmatpush.msra.mxu0 0.0
          %636 = vmatpush.msra.mxu0 0.0
          %637 = vmatpush.msra.mxu0 %v536
          %638 = vmatpush.msra.mxu0 %v535
          %639 = vmatpush.msra.mxu0 %v534
          %640 = vmatpush.msra.mxu0 %v533
          %641 = vmatmul.f32.gmra.mxu0 %v623
          %v642 = vpop.f32.mrf.mxu0
          %v643 = vadd.f32 0.0, %v642
          %644 = vdwg.mxu0
          %v645 = vadd.f32 %v610, %v643
          %v646 = vld [vmem:[%s2] sm:$0x1]
          %v647 = vadd.f32 %v645, %v646
          %v648 = vmax.f32 %v647, 0.0
          %v649 = vld [vmem:[%s3] sm:$0x3]
          %v650 = vld [vmem:[%s4] sm:$0x1]
          %vm651 = vcmask 15360
          %v653 = vsel %vm651, %v648, 0
          %vm655 = vcmask 1041408
          %v657 = vsel %vm655, %v649, 0
          %659 = vmatpush.msra.mxu0 0.0
          %660 = vmatpush.msra.mxu0 0.0
          %661 = vmatpush.msra.mxu0 0.0
          %662 = vmatpush.msra.mxu0 0.0
          %663 = vmatpush.msra.mxu0 0.0
          %664 = vmatpush.msra.mxu0 0.0
          %665 = vmatpush.msra.mxu0 0.0
          %666 = vmatpush.msra.mxu0 0.0
          %667 = vmatpush.msra.mxu0 0.0
          %668 = vmatpush.msra.mxu0 0.0
          %669 = vmatpush.msra.mxu0 0.0
          %670 = vmatpush.msra.mxu0 0.0
          %671 = vmatpush.msra.mxu0 0.0
          %672 = vmatpush.msra.mxu0 0.0
          %673 = vmatpush.msra.mxu0 0.0
          %674 = vmatpush.msra.mxu0 %v657
          %675 = vmatmul.f32.gmra.mxu0 %v653
          %v676 = vpop.f32.mrf.mxu0
          %v677 = vadd.f32 %v650, %v676
          %678 = vdwg.mxu0
          %v679 = vsub.f32 0.0, %v677
          %v680 = vmul.f32 %v679, 1.442695
          %v681 = vpow.pop %v680
          %v682 = vadd.f32 %v681, 1.0
          %v683 = vrcp.pop %v682
          %v684 = vmul.f32 %v682, %v683
          %v685 = vsub.f32 1.0, %v684
          %v686 = vmul.f32 %v683, %v685
          %v687 = vadd.f32 %v683, %v686
          %vm688 = vweird.f32 %v682
          %vm689 = vweird.f32 %v683
          %vm690 = vmor %vm688, %vm689
          %v691 = vsel %vm690, %v683, %v687
          %v692 = vand.u32 2147483647, %v682
          %vm693 = vcmp.eq.f32.partialorder %v692, 8.507059e+37
          %v694 = vand.u32 %v682, 2147483648
          %v695 = vor.u32 1.1754944e-38, %v694
          %v696 = vsel %vm693, %v695, %v691
          %v697 = vmul.f32 1.0, %v696
          %v698 = vmax.f32 %v697, 1e-06
          %v699 = vmin.f32 %v698, 3.4028235e+38
          %vm700 = vcmask 253952
          %701 = vst.msk [vmem:[%s259] sm:$0x1] %vm700, %v699
        $region52: #{tpu_custom_call.1} parent=39 // pred_fallthru
          _
        %s702 = sand.u32 %s154, 1
        %s703 = scalar_lea.sflag [#allocation8], %s702
        %s704 = sand.u32 %s154, 1
        %s705 = scalar_lea.vmem [#allocation9], %s704
        // Predicated region
        $region53: #{tpu_custom_call.1} parent=39 // pred_check
          %p706 = pneg %p164
        $region54: #{tpu_custom_call.1} parent=39 // pred_check_branch
          %708 = sbr.rel (%p706) target = $region56
        $region55: #{tpu_custom_call.1} parent=39 // pred_region
          %710 = vsyncadd %s703, 0
          %s711 = scalar_lea.hbm %s5, %s26
          %s713 = sshll.u32 %s705, 4
          %s714 = int_to_ptr.vmem [resolvable:$true] %s713
          %s715 = sshll.u32 %s711, 4
          %s716 = int_to_ptr.hbm [resolvable:$true] %s715
          %718 = dma.vmem_to_hbm [thread:$0]  %s714, 16, %s716, %s703
        $region56: #{tpu_custom_call.1} parent=39 // pred_fallthru
          _
      $region40: #{tpu_custom_call.1} parent=5 // pred_fallthru
        _
      %p719 = scmp.le.s32.totalorder 2, %s17
      // Predicated region
      $region57: #{tpu_custom_call.1} parent=5 // pred_check
        %p720 = pneg %p719
      $region58: #{tpu_custom_call.1} parent=5 // pred_check_branch
        %722 = sbr.rel (%p720) target = $region60
      $region59: #{tpu_custom_call.1} parent=5 // pred_region
        %s723 = ssub.s32 %s17, 2
        // Predicated region
        $region61: #{tpu_custom_call.1} parent=59 // pred_check
          %p724 = pneg %p170
        $region62: #{tpu_custom_call.1} parent=59 // pred_check_branch
          %726 = sbr.rel (%p724) target = $region64
        $region63: #{tpu_custom_call.1} parent=59 // pred_region
          %s727 = sand.u32 %s155, 1
          %s728 = scalar_lea.sflag [#allocation8], %s727
          %s729 = sand.u32 %s155, 1
          %s730 = scalar_lea.vmem [#allocation9], %s729
          %732 = dma.done %s728, 16
        $region64: #{tpu_custom_call.1} parent=59 // pred_fallthru
          _
      $region60: #{tpu_custom_call.1} parent=5 // pred_fallthru
        _
    $region6: #{tpu_custom_call.1} parent=1 // loop_footer
      %s21 = sadd.s32 1, %s17
    $region7: #{tpu_custom_call.1} parent=1 // loop_footer_branch
      %16 = sbr.rel target = $region3
    $region8: #{tpu_custom_call.1} parent=1 // loop_exit
      _
    %733 = vsyncpa [#allocation7], 1
    %s734 = scalar_lea.sflag [#allocation7], 1
    %735 = vsyncpa %s734, 1
    %736 = vsyncpa [#allocation8], 1
    %s737 = scalar_lea.sflag [#allocation8], 1
    %738 = vsyncpa %s737, 1

</llo_original>
